<compile_context>
chip_gen: v7x
topology: tpu7x:2x2x1
jax: 0.10.0
libtpu: 0.0.40
codegen_flags: <defaults>
</compile_context>

<pallas_src>
import functools

import jax
import jax.numpy as jnp
from jax.experimental import pallas as pl
from jax.experimental.pallas import tpu as pltpu

EPS = 1e-5


def _stats_kernel(x_ref, out_ref, sum_ref, sumsq_ref, shift_ref, *,
                  n_t, t_tile, ragged):
    """Accumulate shifted sum / sum(x^2) over time tiles; finalize at last step.

    x_ref:     (TB, TT, F)  input tile
    out_ref:   (TB, 2, F)   output block (row 0 = mean, row 1 = std+eps),
                            resident across T steps
    sum_ref:   (TB, F)      f32 running sum of (x - shift)
    sumsq_ref: (TB, F)      f32 running sum of (x - shift)^2
    shift_ref: (TB, 1, F)   f32 per-row shift (first time step) for conditioning
    """
    k = pl.program_id(1)

    @pl.when(k == 0)
    def _():
        sum_ref[...] = jnp.zeros_like(sum_ref)
        sumsq_ref[...] = jnp.zeros_like(sumsq_ref)
        shift_ref[...] = x_ref[:, 0:1, :].astype(jnp.float32)

    x = x_ref[...].astype(jnp.float32) - shift_ref[...]   # per-tile upcast only
    if ragged:  # static: only emitted when T % TT != 0
        row = jax.lax.broadcasted_iota(jnp.int32, (1, t_tile, 1), 1)
        valid = (k * t_tile + row) < n_t
        x = jnp.where(valid, x, 0.0)

    sum_ref[...] += jnp.sum(x, axis=1)
    sumsq_ref[...] += jnp.sum(x * x, axis=1)

    @pl.when(k == pl.num_programs(1) - 1)
    def _():
        m = sum_ref[...] * (1.0 / n_t)                    # mean of shifted vals
        mean = shift_ref[...][:, 0, :] + m
        # Unbiased (ddof=1) variance; max(., 1) guards T == 1 (torch gives NaN,
        # we return std = eps instead).
        denom = 1.0 / max(n_t - 1, 1)
        var = (sumsq_ref[...] - n_t * m * m) * denom
        std = jnp.sqrt(jnp.maximum(var, 0.0)) + EPS       # fold +eps in-kernel
        out_ref[:, 0, :] = mean.astype(out_ref.dtype)     # lane-dense rows
        out_ref[:, 1, :] = std.astype(out_ref.dtype)


def _pick_time_tile(t, f, tb, itemsize, target_bytes, pack):
    """Largest pack-aligned TT whose full (TB, TT, F) block is <= target_bytes."""
    max_rows = max(pack, target_bytes // max(1, tb * f * itemsize))
    tt = max(pack, (max_rows // pack) * pack)
    t_padded = pl.cdiv(t, pack) * pack
    return min(tt, t_padded)


def _pooled_stats(x, *, time_tile_bytes=4 << 20):
    """Tiled Pallas reduction. Returns pooled stats [B, 2, F] (mean, std+eps)."""
    b, t, f = x.shape
    itemsize = jnp.dtype(x.dtype).itemsize
    pack = max(8, 32 // itemsize)            # sublane pack: f32=8, bf16=16, i8=32

    # Batch tile: full B (small) or 8; ensure >= 2 batch programs when possible
    # so the v7x megacore's second TensorCore isn't idle for small batches.
    tb = min(b, 8)
    if b >= 2 and pl.cdiv(b, tb) < 2:
        tb = (b + 1) // 2

    tt = _pick_time_tile(t, f, tb, itemsize, time_tile_bytes, pack)
    grid = (pl.cdiv(b, tb), pl.cdiv(t, tt))
    ragged = (t % tt) != 0

    # Explicit VMEM budget: 2x double-buffered input block + f32 temporaries
    # (x upcast and x*x) + output + scratch + headroom; capped for v7x (64 MiB).
    block_bytes = tb * tt * f * itemsize
    f32_block_bytes = tb * tt * f * 4
    out_bytes = tb * 2 * f * itemsize
    scratch_bytes = 3 * tb * f * 4
    vmem_limit = (2 * block_bytes + 2 * f32_block_bytes + 2 * out_bytes
                  + scratch_bytes + (2 << 20))
    vmem_limit = int(min(max(vmem_limit, 16 << 20), 56 << 20))

    kernel = functools.partial(_stats_kernel, n_t=t, t_tile=tt, ragged=ragged)

    cost = pl.CostEstimate(
        flops=3 * b * t * f,
        transcendentals=0,
        bytes_accessed=b * t * f * itemsize + b * 2 * f * itemsize,
    )

    return pl.pallas_call(
        kernel,
        out_shape=jax.ShapeDtypeStruct((b, 2, f), x.dtype),
        grid_spec=pltpu.PrefetchScalarGridSpec(
            num_scalar_prefetch=0,
            grid=grid,
            in_specs=[pl.BlockSpec((tb, tt, f), lambda i, k: (i, k, 0))],
            out_specs=pl.BlockSpec((tb, 2, f), lambda i, k: (i, 0, 0)),
            scratch_shapes=[
                pltpu.VMEM((tb, f), jnp.float32),      # running sum
                pltpu.VMEM((tb, f), jnp.float32),      # running sum of squares
                pltpu.VMEM((tb, 1, f), jnp.float32),   # per-row shift
            ],
        ),
        compiler_params=pltpu.CompilerParams(
            dimension_semantics=("parallel", "arbitrary"),
            vmem_limit_bytes=vmem_limit,
        ),
        cost_estimate=cost,
    )(x)


def statistics_pooling(x, key, lengths=None, *, time_tile_bytes=4 << 20):
    """JAX/Pallas equivalent of StatisticsPooling.forward (lengths=None path).

    x: [B, T, F] -> [B, 1, 2F]
    """
    # TODO(synk): the `lengths is not None` branch (per-utterance variable-length
    # slicing x[snt, 1:actual_size-1]) is not implemented; it needs scalar
    # prefetch of per-row lengths plus per-row time masking in the kernel.
    assert lengths is None

    b, t, f = x.shape
    pooled = _pooled_stats(x, time_tile_bytes=time_tile_bytes)  # [B, 2, F]

    # Gaussian "epsilon" noise, matching _get_gauss_noise semantics:
    # randn -> shift to min 0 -> scale to max 1 -> eps * ((1-9)*g + 9)
    g = jax.random.normal(key, (b, f), dtype=jnp.float32)
    g = g - jnp.min(g)
    g = g / jnp.maximum(jnp.max(g), 1e-20)              # guard against /0
    g = EPS * ((1 - 9) * g + 9)

    pooled = pooled.at[:, 0, :].add(g.astype(pooled.dtype))  # noise on mean half
    # (B, 2, F) -> (B, 1, 2F): row-major reshape == concat(mean, std) on dim 1.
    return pooled.reshape(b, 1, 2 * f)


if __name__ == "__main__":
    key = jax.random.PRNGKey(0)
    k_x, k_noise = jax.random.split(key)

    # Primary small test (single T step, 2 batch programs).
    B, T, F = 2, 16, 32
    x = jax.random.uniform(k_x, (B, T, F), dtype=jnp.float32)
    out = jax.block_until_ready(statistics_pooling(x, k_noise))

    assert out.shape == (B, 1, 2 * F)
    ref_mean = jnp.mean(x, axis=1)
    ref_std = jnp.std(x, axis=1, ddof=1)
    # mean differs only by the tiny gaussian noise (<= 9*eps), std only by eps
    assert jnp.max(jnp.abs(out[:, 0, :F] - ref_mean)) < 1e-3
    assert jnp.max(jnp.abs(out[:, 0, F:] - ref_std)) < 1e-3

    # Second test: ragged batch (B=3, TB=2), ragged T (50 = 3*16 + 2) and a
    # multi-step T reduction (tiny tile budget) to exercise masking + the
    # accumulator init/finalize path. Also uses a nonzero mean to exercise the
    # shift-based conditioning.
    B2, T2, F2 = 3, 50, 128
    x2 = 5.0 + jax.random.normal(jax.random.PRNGKey(1), (B2, T2, F2),
                                 dtype=jnp.float32)
    out2 = jax.block_until_ready(
        statistics_pooling(x2, k_noise, time_tile_bytes=16 * 2 * F2 * 4)
    )
    assert out2.shape == (B2, 1, 2 * F2)
    ref_mean2 = jnp.mean(x2, axis=1)
    ref_std2 = jnp.std(x2, axis=1, ddof=1)
    assert jnp.max(jnp.abs(out2[:, 0, :F2] - ref_mean2)) < 1e-3
    assert jnp.max(jnp.abs(out2[:, 0, F2:] - ref_std2)) < 1e-3

    print("KERNEL_OK")
</pallas_src>

<mosaic_0001>
module attributes {stable_mosaic.version = 11 : i64} {
  func.func @_stats_kernel(%arg0: i32, %arg1: i32, %arg2: memref<1x16x32xf32, #tpu.memory_space<vmem>>, %arg3: memref<1x2x32xf32, #tpu.memory_space<vmem>>, %arg4: memref<1x32xf32, #tpu.memory_space<vmem>>, %arg5: memref<1x32xf32, #tpu.memory_space<vmem>>, %arg6: memref<1x1x32xf32, #tpu.memory_space<vmem>>) attributes {dimension_semantics = [#tpu.dimension_semantics<parallel>, #tpu.dimension_semantics<arbitrary>], iteration_bounds = array<i64: 2, 1>, scalar_prefetch = 0 : i64, scratch_operands = 3 : i64, tpu.core_type = #tpu.core_type<tc>, window_params = [{transform_indices = @transform_0, window_bounds = array<i64: 1, 16, 32>}, {transform_indices = @transform_1, window_bounds = array<i64: 1, 2, 32>}]} {
    %c0_i32 = arith.constant 0 : i32
    %0 = arith.cmpi eq, %arg1, %c0_i32 : i32
    %1 = arith.extui %0 : i1 to i32
    %c0_i32_0 = arith.constant 0 : i32
    %2 = arith.cmpi ne, %1, %c0_i32_0 : i32
    scf.if %2 {
      %cst_17 = arith.constant 0.000000e+00 : f32
      %19 = vector.broadcast %cst_17 : f32 to vector<1x32xf32>
      %c0_18 = arith.constant 0 : index
      %c0_19 = arith.constant 0 : index
      %20 = vector.load %arg4[%c0_18, %c0_19] : memref<1x32xf32, #tpu.memory_space<vmem>>, vector<1x32xf32>
      tpu.vector_store %arg4[%c0_18, %c0_19], %19 {strides = array<i32>} : memref<1x32xf32, #tpu.memory_space<vmem>>, vector<1x32xf32>,
      %cst_20 = arith.constant 0.000000e+00 : f32
      %21 = vector.broadcast %cst_20 : f32 to vector<1x32xf32>
      %c0_21 = arith.constant 0 : index
      %c0_22 = arith.constant 0 : index
      %22 = vector.load %arg5[%c0_21, %c0_22] : memref<1x32xf32, #tpu.memory_space<vmem>>, vector<1x32xf32>
      tpu.vector_store %arg5[%c0_21, %c0_22], %21 {strides = array<i32>} : memref<1x32xf32, #tpu.memory_space<vmem>>, vector<1x32xf32>,
      %c0_23 = arith.constant 0 : index
      %c0_24 = arith.constant 0 : index
      %c0_25 = arith.constant 0 : index
      %23 = vector.load %arg2[%c0_23, %c0_24, %c0_25] : memref<1x16x32xf32, #tpu.memory_space<vmem>>, vector<1x1x32xf32>
      %c0_26 = arith.constant 0 : index
      %c0_27 = arith.constant 0 : index
      %c0_28 = arith.constant 0 : index
      %24 = vector.load %arg6[%c0_26, %c0_27, %c0_28] : memref<1x1x32xf32, #tpu.memory_space<vmem>>, vector<1x1x32xf32>
      tpu.vector_store %arg6[%c0_26, %c0_27, %c0_28], %23 {strides = array<i32>} : memref<1x1x32xf32, #tpu.memory_space<vmem>>, vector<1x1x32xf32>,
    } else {
    }
    %c0 = arith.constant 0 : index
    %c0_1 = arith.constant 0 : index
    %c0_2 = arith.constant 0 : index
    %3 = vector.load %arg2[%c0, %c0_1, %c0_2] : memref<1x16x32xf32, #tpu.memory_space<vmem>>, vector<1x16x32xf32>
    %c0_3 = arith.constant 0 : index
    %c0_4 = arith.constant 0 : index
    %c0_5 = arith.constant 0 : index
    %4 = vector.load %arg6[%c0_3, %c0_4, %c0_5] : memref<1x1x32xf32, #tpu.memory_space<vmem>>, vector<1x1x32xf32>
    %5 = vector.broadcast %4 : vector<1x1x32xf32> to vector<1x16x32xf32>
    %6 = arith.subf %3, %5 : vector<1x16x32xf32>
    %c0_6 = arith.constant 0 : index
    %c0_7 = arith.constant 0 : index
    %7 = vector.load %arg4[%c0_6, %c0_7] : memref<1x32xf32, #tpu.memory_space<vmem>>, vector<1x32xf32>
    %cst = arith.constant dense<0.000000e+00> : vector<1x32xf32>
    %8 = vector.multi_reduction <add>, %6, %cst [1] : vector<1x16x32xf32> to vector<1x32xf32>
    %9 = arith.addf %7, %8 : vector<1x32xf32>
    %c0_8 = arith.constant 0 : index
    %c0_9 = arith.constant 0 : index
    %10 = vector.load %arg4[%c0_8, %c0_9] : memref<1x32xf32, #tpu.memory_space<vmem>>, vector<1x32xf32>
    tpu.vector_store %arg4[%c0_8, %c0_9], %9 {strides = array<i32>} : memref<1x32xf32, #tpu.memory_space<vmem>>, vector<1x32xf32>,
    %c0_10 = arith.constant 0 : index
    %c0_11 = arith.constant 0 : index
    %11 = vector.load %arg5[%c0_10, %c0_11] : memref<1x32xf32, #tpu.memory_space<vmem>>, vector<1x32xf32>
    %12 = arith.mulf %6, %6 : vector<1x16x32xf32>
    %cst_12 = arith.constant dense<0.000000e+00> : vector<1x32xf32>
    %13 = vector.multi_reduction <add>, %12, %cst_12 [1] : vector<1x16x32xf32> to vector<1x32xf32>
    %14 = arith.addf %11, %13 : vector<1x32xf32>
    %c0_13 = arith.constant 0 : index
    %c0_14 = arith.constant 0 : index
    %15 = vector.load %arg5[%c0_13, %c0_14] : memref<1x32xf32, #tpu.memory_space<vmem>>, vector<1x32xf32>
    tpu.vector_store %arg5[%c0_13, %c0_14], %14 {strides = array<i32>} : memref<1x32xf32, #tpu.memory_space<vmem>>, vector<1x32xf32>,
    %c0_i32_15 = arith.constant 0 : i32
    %16 = arith.cmpi eq, %arg1, %c0_i32_15 : i32
    %17 = arith.extui %16 : i1 to i32
    %c0_i32_16 = arith.constant 0 : i32
    %18 = arith.cmpi ne, %17, %c0_i32_16 : i32
    scf.if %18 {
      %c0_17 = arith.constant 0 : index
      %c0_18 = arith.constant 0 : index
      %19 = vector.load %arg4[%c0_17, %c0_18] : memref<1x32xf32, #tpu.memory_space<vmem>>, vector<1x32xf32>
      %cst_19 = arith.constant 6.250000e-02 : f32
      %20 = vector.broadcast %cst_19 : f32 to vector<1x32xf32>
      %21 = arith.mulf %19, %20 : vector<1x32xf32>
      %c0_20 = arith.constant 0 : index
      %c0_21 = arith.constant 0 : index
      %c0_22 = arith.constant 0 : index
      %22 = vector.load %arg6[%c0_20, %c0_21, %c0_22] : memref<1x1x32xf32, #tpu.memory_space<vmem>>, vector<1x1x32xf32>
      %23 = vector.shape_cast %22 : vector<1x1x32xf32> to vector<1x32xf32>
      %24 = arith.addf %23, %21 : vector<1x32xf32>
      %c0_23 = arith.constant 0 : index
      %c0_24 = arith.constant 0 : index
      %25 = vector.load %arg5[%c0_23, %c0_24] : memref<1x32xf32, #tpu.memory_space<vmem>>, vector<1x32xf32>
      %cst_25 = arith.constant 1.600000e+01 : f32
      %26 = vector.broadcast %cst_25 : f32 to vector<1x32xf32>
      %27 = arith.mulf %26, %21 : vector<1x32xf32>
      %28 = arith.mulf %27, %21 : vector<1x32xf32>
      %29 = arith.subf %25, %28 : vector<1x32xf32>
      %cst_26 = arith.constant 0.0666666701 : f32
      %30 = vector.broadcast %cst_26 : f32 to vector<1x32xf32>
      %31 = arith.mulf %29, %30 : vector<1x32xf32>
      %cst_27 = arith.constant 0.000000e+00 : f32
      %32 = vector.broadcast %cst_27 : f32 to vector<1x32xf32>
      %33 = arith.maximumf %31, %32 : vector<1x32xf32>
      %34 = math.sqrt %33 : vector<1x32xf32>
      %cst_28 = arith.constant 9.99999974E-6 : f32
      %35 = vector.broadcast %cst_28 : f32 to vector<1x32xf32>
      %36 = arith.addf %34, %35 : vector<1x32xf32>
      %c0_29 = arith.constant 0 : index
      %c0_30 = arith.constant 0 : index
      %c0_31 = arith.constant 0 : index
      %37 = vector.load %arg3[%c0_29, %c0_30, %c0_31] : memref<1x2x32xf32, #tpu.memory_space<vmem>>, vector<1x1x32xf32>
      %38 = vector.shape_cast %37 : vector<1x1x32xf32> to vector<1x32xf32>
      %39 = vector.shape_cast %24 : vector<1x32xf32> to vector<1x1x32xf32>
      tpu.vector_store %arg3[%c0_29, %c0_30, %c0_31], %39 {strides = array<i32>} : memref<1x2x32xf32, #tpu.memory_space<vmem>>, vector<1x1x32xf32>,
      %c0_32 = arith.constant 0 : index
      %c1 = arith.constant 1 : index
      %c0_33 = arith.constant 0 : index
      %40 = vector.load %arg3[%c0_32, %c1, %c0_33] : memref<1x2x32xf32, #tpu.memory_space<vmem>>, vector<1x1x32xf32>
      %41 = vector.shape_cast %40 : vector<1x1x32xf32> to vector<1x32xf32>
      %42 = vector.shape_cast %36 : vector<1x32xf32> to vector<1x1x32xf32>
      tpu.vector_store %arg3[%c0_32, %c1, %c0_33], %42 {strides = array<i32>} : memref<1x2x32xf32, #tpu.memory_space<vmem>>, vector<1x1x32xf32>,
    } else {
    }
    return
  }
  func.func @transform_0(%arg0: i32, %arg1: i32) -> (i32, i32, i32) {
    %c0_i32 = arith.constant 0 : i32
    %c0_i32_0 = arith.constant 0 : i32
    return %arg0, %arg1, %c0_i32 : i32, i32, i32
  }
  func.func @transform_1(%arg0: i32, %arg1: i32) -> (i32, i32, i32) {
    %c0_i32 = arith.constant 0 : i32
    %c0_i32_0 = arith.constant 0 : i32
    %c0_i32_1 = arith.constant 0 : i32
    return %arg0, %c0_i32, %c0_i32_0 : i32, i32, i32
  }
}

</mosaic_0001>

<llo_original>
// kernel: tpu_custom_call.1
$region0: #{tpu_custom_call.1}
  #allocation0 [shape = 'u32[]', space=smem, size = 0x4, offset = 0x4, fixed_abs, tag = 'smem constant byte address 0x4 - core index']
  #allocation1 [shape = 'u32[144,128]{1,0:T(1,128)}', space=vmem, size = 0x12000, scoped, tag = 'internal scratch']
  #allocation2 [shape = 'f32[1,32]{1,0:T(1,128)}', space=vmem, size = 0x200, scoped, tag = 'scratch operand']
  #allocation3 [shape = 'f32[1,32]{1,0:T(1,128)}', space=vmem, size = 0x200, scoped, tag = 'scratch operand']
  #allocation4 [shape = 'f32[1,1,32]{2,1,0:T(1,128)}', space=vmem, size = 0x200, scoped, tag = 'scratch operand']
  %s0 = inlined_call_operand.hbm [shape: f32[2,16,32], index: 0, kind: input, shape index: {}]
  %s1 = inlined_call_operand.hbm [shape: f32[2,2,32], index: 1, kind: output, shape index: {}]
  %s2 = sld [smem:[#allocation0]]
  $region49: #{tpu_custom_call.1} parent=0
    _
  %s4 = ssub.s32 1, %s2
  %s5 = scalar_select 0, %s4, %s2
  $region1: #{tpu_custom_call.1} parent=0
    #allocation5 [shape = 'u8[16384]{0}', space=vmem, size = 0x4000, scoped, tag = 'input window, operand 0']
    #allocation6 [shape = 's32[2]{0}', space=sflag, size = 0x8, scoped, tag = 'scoped memory for tpu_custom_call.1']
    #allocation7 [shape = 's32[2]{0}', space=sflag, size = 0x8, scoped, tag = 'scoped memory for tpu_custom_call.1']
    #allocation8 [shape = 'u8[2048]{0}', space=vmem, size = 0x800, scoped, tag = 'output window, operand 0']
    %6 = vsyncpa [#allocation6], 0
    %s7 = scalar_lea.sflag [#allocation6], 1
    %8 = vsyncpa %s7, 0
    %9 = vsyncpa [#allocation7], 0
    %s10 = scalar_lea.sflag [#allocation7], 1
    %11 = vsyncpa %s10, 0
    loop: start=0, step=1, limit=4
    $region2: #{tpu_custom_call.1} parent=1 // loop_pre_header
      _
    $region3: #{tpu_custom_call.1} parent=1 // loop_header
      %s13 = sphi 0, %s17
      %p14 = scmp.ge.s32.totalorder %s13, 4
      %s20 = sphi 0, %s32
      %s21 = sphi 0, %s28
      %s22 = sphi 0, %s20
      %s23 = sphi 0, %s21
      %s24 = sphi 0, %s22
      %s25 = sphi 0, %s23
      %s37 = sphi 0, %s39
      %s40 = sphi 0, %s37
      %s41 = sphi 0, %s40
      %s57 = sphi 0, %s41
      %s63 = sphi 0, %s65
      %s66 = sphi 0, %s63
      %s67 = sphi 0, %s66
      %s83 = sphi 0, %s67
    $region4: #{tpu_custom_call.1} parent=1 // loop_header_branch
      %16 = sbr.rel (%p14) target = $region8
    $region5: #{tpu_custom_call.1} parent=1 // loop_body
      %s18 = ssub.s32 %s13, 1
      %s19 = ssub.s32 %s13, 2
      %s26 = sadd.s32 1, %s21
      %p27 = scmp.ge.s32.totalorder %s26, 1
      %s28 = scalar_select %p27, 0, %s26
      %s29 = sadd.s32 1, %s20
      %s30 = scalar_select %p27, %s29, %s20
      %p31 = scmp.ge.s32.totalorder %s30, 2
      %s32 = scalar_select %p31, 0, %s30
      %s33 = ssub.s32 %s20, %s32
      %s34 = ssub.s32 %s21, %s28
      %s35 = sor.u32 %s33, %s34
      %p36 = scmp.eq.s32.totalorder %s35, 0
      %s38 = sadd.s32 %s37, 1
      %s39 = scalar_select %p36, %s37, %s38
      %p42 = pneg %p36
      %p43 = scmp.eq.s32.totalorder %s13, 1
      %p44 = por %p42, %p43
      %p45 = scmp.ne.s32.totalorder %s37, %s40
      %p46 = scmp.eq.s32.totalorder %s13, 0
      %p47 = por %p45, %p46
      %p48 = scmp.ne.s32.totalorder %s37, %s40
      %p49 = scmp.eq.s32.totalorder %s18, 1
      %p50 = por %p48, %p49
      %p51 = scmp.ne.s32.totalorder %s40, %s41
      %p52 = scmp.eq.s32.totalorder %s18, 0
      %p53 = por %p51, %p52
      %p54 = scmp.ne.s32.totalorder %s40, %s41
      %p55 = scmp.eq.s32.totalorder %s19, 1
      %p56 = por %p54, %p55
      %p58 = scmp.ne.s32.totalorder %s41, %s57
      %p59 = scmp.eq.s32.totalorder %s19, 0
      %p60 = por %p58, %p59
      %s61 = ssub.s32 %s20, %s32
      %p62 = scmp.eq.s32.totalorder %s61, 0
      %s64 = sadd.s32 %s63, 1
      %s65 = scalar_select %p62, %s63, %s64
      %p68 = pneg %p62
      %p69 = scmp.eq.s32.totalorder %s13, 1
      %p70 = por %p68, %p69
      %p71 = scmp.ne.s32.totalorder %s63, %s66
      %p72 = scmp.eq.s32.totalorder %s13, 0
      %p73 = por %p71, %p72
      %p74 = scmp.ne.s32.totalorder %s63, %s66
      %p75 = scmp.eq.s32.totalorder %s18, 1
      %p76 = por %p74, %p75
      %p77 = scmp.ne.s32.totalorder %s66, %s67
      %p78 = scmp.eq.s32.totalorder %s18, 0
      %p79 = por %p77, %p78
      %p80 = scmp.ne.s32.totalorder %s66, %s67
      %p81 = scmp.eq.s32.totalorder %s19, 1
      %p82 = por %p80, %p81
      %p84 = scmp.ne.s32.totalorder %s67, %s83
      %p85 = scmp.eq.s32.totalorder %s19, 0
      %p86 = por %p84, %p85
      %p87 = scmp.le.s32.totalorder 1, %s13
      %p88 = scmp.lt.s32.totalorder %s13, 3
      %p89 = pnand %p87, %p88
      %p90 = pneg %p89
      // Predicated region
      $region9: #{tpu_custom_call.1} parent=5 // pred_check
        _
      $region10: #{tpu_custom_call.1} parent=5 // pred_check_branch
        %92 = sbr.rel (%p89) target = $region12
      $region11: #{tpu_custom_call.1} parent=5 // pred_region
        %s93 = ssub.s32 %s13, 1
      $region12: #{tpu_custom_call.1} parent=5 // pred_fallthru
        _
      %p94 = scmp.lt.s32.totalorder %s13, 2
      // Predicated region
      $region13: #{tpu_custom_call.1} parent=5 // pred_check
        %p95 = pneg %p94
      $region14: #{tpu_custom_call.1} parent=5 // pred_check_branch
        %97 = sbr.rel (%p95) target = $region16
      $region15: #{tpu_custom_call.1} parent=5 // pred_region
        // Predicated region
        $region17: #{tpu_custom_call.1} parent=15 // pred_check
          %p98 = pneg %p47
        $region18: #{tpu_custom_call.1} parent=15 // pred_check_branch
          %100 = sbr.rel (%p98) target = $region20
        $region19: #{tpu_custom_call.1} parent=15 // pred_region
          %s101 = sand.u32 %s37, 1
          %s102 = scalar_lea.sflag [#allocation6], %s101
          %s103 = sand.u32 %s37, 1
          %s104 = smul.addr %s103, 16
          %s105 = scalar_lea.vmem [#allocation5], %s104
          %s106 = smul.u32 2, %s21
          %s108 = ssub.s32 256, 256
          %109 = vsyncadd %s102, %s108
          %s110 = smul.addr %s20, 2
          %s111 = sadd.s32 %s106, %s110
          %s112 = smul.addr %s111, 128
          %s113 = scalar_lea.hbm %s0, %s112
          %s114 = sshll.u32 %s105, 4
          %s115 = int_to_ptr.vmem [resolvable:$true] %s114
          %120 = dma.hbm_to_vmem [thread:$0]  %s113, 256, %s115, %s102, 128, 128, 8
        $region20: #{tpu_custom_call.1} parent=15 // pred_fallthru
          _
      $region16: #{tpu_custom_call.1} parent=5 // pred_fallthru
        _
      %p121 = scmp.le.s32.totalorder 1, %s13
      %p122 = scmp.lt.s32.totalorder %s13, 3
      %p123 = pnand %p121, %p122
      %p124 = pneg %p123
      // Predicated region
      $region21: #{tpu_custom_call.1} parent=5 // pred_check
        _
      $region22: #{tpu_custom_call.1} parent=5 // pred_check_branch
        %126 = sbr.rel (%p123) target = $region24
      $region23: #{tpu_custom_call.1} parent=5 // pred_region
        %s127 = ssub.s32 %s13, 1
        %s128 = sand.u32 %s40, 1
        %s129 = scalar_lea.sflag [#allocation6], %s128
        %s130 = sand.u32 %s40, 1
        %s131 = smul.addr %s130, 16
        %s132 = scalar_lea.vmem [#allocation5], %s131
        // Predicated region
        $region25: #{tpu_custom_call.1} parent=23 // pred_check
          %p133 = pneg %p53
        $region26: #{tpu_custom_call.1} parent=23 // pred_check_branch
          %135 = sbr.rel (%p133) target = $region28
        $region27: #{tpu_custom_call.1} parent=23 // pred_region
          %136 = dma.done %s129, 256
        $region28: #{tpu_custom_call.1} parent=23 // pred_fallthru
          _
        %s137 = sand.u32 %s40, 1
        %s138 = scalar_lea.sflag [#allocation6], %s137
        %s139 = sand.u32 %s40, 1
        %s140 = smul.addr %s139, 16
        %s141 = scalar_lea.vmem [#allocation5], %s140
        %p142 = pneg %p53
        %p143 = pneg %p50
        %p144 = pneg %p79
        %p145 = pneg %p76
        %s146 = sand.u32 %s66, 1
        %s147 = scalar_lea.sflag [#allocation7], %s146
        %s148 = sand.u32 %s66, 1
        %s149 = smul.addr %s148, 2
        %s150 = scalar_lea.vmem [#allocation8], %s149
        %s151 = smul.u32 2, %s23
        %p152 = scmp.eq.s32.totalorder %s23, 0
        // Predicated region
        $region29: #{tpu_custom_call.1} parent=23 // pred_check
          %p153 = pneg %p152
        $region30: #{tpu_custom_call.1} parent=23 // pred_check_branch
          %155 = sbr.rel (%p153) target = $region32
        $region31: #{tpu_custom_call.1} parent=23 // pred_region
          %vm156 = vcmask 253952
          %157 = vst.msk [vmem:[#allocation2] sm:$0x1] %vm156, 0.0
          %158 = vst.msk [vmem:[#allocation3] sm:$0x1] %vm156, 0.0
          %v159 = vld [vmem:[%s132] sm:$0x1]
          %160 = vst.msk [vmem:[#allocation4] sm:$0x1] %vm156, %v159
        $region32: #{tpu_custom_call.1} parent=23 // pred_fallthru
          _
        %v161 = vld [vmem:[%s132] sm:$0xff]
        %v162 = vld [vmem:[%s132 + $0x8] sm:$0xff]
        %v163 = vld [vmem:[#allocation4] sm:$0x1]
        %v165 = vlaneseq
        %v166 = vshrl.u32 %v165, 7
        %v167 = vsub.s32 0, %v166
        %v168 = vrot.slane %v163, %v167
        %v170 = vsub.f32 %v161, %v168
        %v171 = vsub.f32 %v162, %v168
        %v172 = vld [vmem:[#allocation2] sm:$0x1]
        %vm173 = vcmask 261120
        %v174 = vsel %vm173, %v170, 0.0
        %v175 = vsel %vm173, %v171, 0.0
        %v176 = vadd.f32 %v174, %v175
        %v177 = vrot.slane %v176, 4
        %v178 = vadd.f32 %v176, %v177
        %v179 = vrot.slane %v178, 2
        %v180 = vadd.f32 %v178, %v179
        %v181 = vrot.slane %v180, 1
        %v182 = vadd.f32 %v180, %v181
        %v183 = vadd.f32 %v172, %v182
        %vm184 = vcmask 253952
        %185 = vst.msk [vmem:[#allocation2] sm:$0x1] %vm184, %v183
        %v186 = vld [vmem:[#allocation3] sm:$0x1]
        %v187 = vmul.f32 %v170, %v170
        %v188 = vmul.f32 %v171, %v171
        %v189 = vsel %vm173, %v187, 0.0
        %v190 = vsel %vm173, %v188, 0.0
        %v191 = vadd.f32 %v189, %v190
        %v192 = vrot.slane %v191, 4
        %v193 = vadd.f32 %v191, %v192
        %v194 = vrot.slane %v193, 2
        %v195 = vadd.f32 %v193, %v194
        %v196 = vrot.slane %v195, 1
        %v197 = vadd.f32 %v195, %v196
        %v198 = vadd.f32 %v186, %v197
        %199 = vst.msk [vmem:[#allocation3] sm:$0x1] %vm184, %v198
        // Predicated region
        $region33: #{tpu_custom_call.1} parent=23 // pred_check
          %p200 = pneg %p152
        $region34: #{tpu_custom_call.1} parent=23 // pred_check_branch
          %202 = sbr.rel (%p200) target = $region36
        $region35: #{tpu_custom_call.1} parent=23 // pred_region
          %v203 = vld [vmem:[#allocation2] sm:$0x1]
          %v204 = vmul.f32 %v203, 0.0625
          %v205 = vld [vmem:[#allocation4] sm:$0x1]
          %v206 = vadd.f32 %v205, %v204
          %v207 = vld [vmem:[#allocation3] sm:$0x1]
          %v208 = vmul.f32 %v204, 16.0
          %v209 = vmul.f32 %v208, %v204
          %v210 = vsub.f32 %v207, %v209
          %v211 = vmul.f32 %v210, 0.06666667
          %v212 = vmax.f32 %v211, 0.0
          %v213 = vrsqrt.pop %v212
          %v214 = vmul.f32 %v212, %v213
          %vm215 = vcmp.eq.f32.partialorder %v212, inf
          %v216 = vsel %vm215, %v212, %v214
          %vm217 = vcmp.eq.f32.partialorder %v212, 0.0
          %v218 = vand.u32 %v212, 2147483648
          %v219 = vsel %vm217, %v218, %v216
          %v220 = vadd.f32 %v219, 1e-05
          %221 = vst.msk [vmem:[%s150] sm:$0x1] %vm184, %v206
          %222 = vst.msk [vmem:[%s150 + $0x1] sm:$0x1] %vm184, %v220
        $region36: #{tpu_custom_call.1} parent=23 // pred_fallthru
          _
        %s223 = sand.u32 %s66, 1
        %s224 = scalar_lea.sflag [#allocation7], %s223
        %s225 = sand.u32 %s66, 1
        %s226 = smul.addr %s225, 2
        %s227 = scalar_lea.vmem [#allocation8], %s226
        // Predicated region
        $region37: #{tpu_custom_call.1} parent=23 // pred_check
          %p228 = pneg %p76
        $region38: #{tpu_custom_call.1} parent=23 // pred_check_branch
          %230 = sbr.rel (%p228) target = $region40
        $region39: #{tpu_custom_call.1} parent=23 // pred_region
          %s232 = ssub.s32 32, 32
          %233 = vsyncadd %s224, %s232
          %s234 = smul.addr %s22, 32
          %s235 = scalar_lea.hbm %s1, %s234
          %s237 = sshll.u32 %s227, 4
          %s238 = int_to_ptr.vmem [resolvable:$true] %s237
          %240 = dma.vmem_to_hbm [thread:$0]  %s238, 32, %s235, %s224
        $region40: #{tpu_custom_call.1} parent=23 // pred_fallthru
          _
      $region24: #{tpu_custom_call.1} parent=5 // pred_fallthru
        _
      %p241 = scmp.le.s32.totalorder 2, %s13
      // Predicated region
      $region41: #{tpu_custom_call.1} parent=5 // pred_check
        %p242 = pneg %p241
      $region42: #{tpu_custom_call.1} parent=5 // pred_check_branch
        %244 = sbr.rel (%p242) target = $region44
      $region43: #{tpu_custom_call.1} parent=5 // pred_region
        %s245 = ssub.s32 %s13, 2
        // Predicated region
        $region45: #{tpu_custom_call.1} parent=43 // pred_check
          %p246 = pneg %p82
        $region46: #{tpu_custom_call.1} parent=43 // pred_check_branch
          %248 = sbr.rel (%p246) target = $region48
        $region47: #{tpu_custom_call.1} parent=43 // pred_region
          %s249 = sand.u32 %s67, 1
          %s250 = scalar_lea.sflag [#allocation7], %s249
          %s251 = sand.u32 %s67, 1
          %s252 = smul.addr %s251, 2
          %s253 = scalar_lea.vmem [#allocation8], %s252
          %254 = dma.done %s250, 32
        $region48: #{tpu_custom_call.1} parent=43 // pred_fallthru
          _
      $region44: #{tpu_custom_call.1} parent=5 // pred_fallthru
        _
    $region6: #{tpu_custom_call.1} parent=1 // loop_footer
      %s17 = sadd.s32 1, %s13
    $region7: #{tpu_custom_call.1} parent=1 // loop_footer_branch
      %12 = sbr.rel target = $region3
    $region8: #{tpu_custom_call.1} parent=1 // loop_exit
      _
    %255 = vsyncpa [#allocation6], 1
    %s256 = scalar_lea.sflag [#allocation6], 1
    %257 = vsyncpa %s256, 1
    %258 = vsyncpa [#allocation7], 1
    %s259 = scalar_lea.sflag [#allocation7], 1
    %260 = vsyncpa %s259, 1

</llo_original>
